<compile_context>
chip_gen: v7x
topology: tpu7x:2x2x1
jax: 0.10.0
libtpu: 0.0.40
codegen_flags: <defaults>
</compile_context>

<pallas_src>
import functools

import jax
import jax.numpy as jnp
from jax.experimental import pallas as pl
from jax.experimental.pallas import tpu as pltpu


def _round_up(n, m):
    return ((n + m - 1) // m) * m


def _mlp_kernel(x_ref, w1_ref, b1_ref, w2_ref, b2_ref, w3_ref, b3_ref, o_ref,
                *, rc, n_chunks):
    """One (TB, F) batch tile -> (TB, 1) sigmoid outputs, in rc-row chunks."""
    # Weights/biases are tiny and VMEM-resident (constant index_map); hoist
    # the loads out of the chunk loop.
    w1 = w1_ref[...]
    b1 = b1_ref[...]
    w2 = w2_ref[...]
    b2 = b2_ref[...]
    w3 = w3_ref[...]
    b3 = b3_ref[...]

    @pl.loop(0, n_chunks)
    def _(c):
        r = pl.multiple_of(c * rc, rc)
        x = x_ref[pl.ds(r, rc), :]                              # (rc, F) f32

        # fc1 + ReLU (f32 MXU matmul, f32 accumulation)
        h1 = jnp.dot(x, w1, preferred_element_type=jnp.float32) + b1
        h1 = jnp.maximum(h1, 0.0)                               # (rc, 32)

        # fc2 + ReLU
        h2 = jnp.dot(h1, w2, preferred_element_type=jnp.float32) + b2
        h2 = jnp.maximum(h2, 0.0)                               # (rc, 64)

        # fc3 + numerically-safe sigmoid (exp -> EUP, approx recip -> EUP)
        z = jnp.dot(h2, w3, preferred_element_type=jnp.float32) + b3   # (rc, 1)
        z = jnp.clip(z, -30.0, 30.0)
        o_ref[pl.ds(r, rc), :] = pl.reciprocal(1.0 + jnp.exp(-z), approx=True)


@functools.partial(jax.jit, static_argnames=("block_b", "row_chunk"))
def net_forward(x, params, *, block_b=8192, row_chunk=1024):
    """x: (B, F) float32. params: dict of w1,b1,w2,b2,w3,b3 (weights (in,out))."""
    B, F = x.shape
    x = x.astype(jnp.float32)   # no-op for f32 inputs (elided by XLA)

    # --- Batch tile (TB) selection ---------------------------------------
    if B >= 2 * block_b:
        TB = block_b                       # many grid steps; amortizes the
                                           # ~0.35 us per-step fixed overhead
    elif B > 1024:
        TB = _round_up((B + 1) // 2, 8)    # exactly 2 grid steps -> both v7x
                                           # TensorCores get work
    else:
        TB = _round_up(B, 8)               # tiny batch: single step

    # Inner row-chunk bounds the lane-padded f32 intermediates to rc-sized
    # temporaries, decoupling DMA tile size (TB) from the compute working set.
    if TB % row_chunk == 0 and row_chunk % 8 == 0:
        RC = row_chunk
    else:
        RC = TB
    n_chunks = TB // RC

    grid = (pl.cdiv(B, TB),)               # ragged tail -> Pallas masks the
                                           # partial last block; no jnp.pad.

    w1, b1 = params["w1"], params["b1"]
    w2, b2 = params["w2"], params["b2"]
    w3, b3 = params["w3"], params["b3"]

    # Weights/biases: constant index_map -> loaded once, VMEM-resident.
    const2 = lambda a: pl.BlockSpec(a.shape, lambda i: (0, 0))

    kernel = functools.partial(_mlp_kernel, rc=RC, n_chunks=n_chunks)

    out = pl.pallas_call(
        kernel,
        out_shape=jax.ShapeDtypeStruct((B, 1), jnp.float32),
        grid=grid,
        in_specs=[
            pl.BlockSpec((TB, F), lambda i: (i, 0)),   # streamed f32 x tiles
            const2(w1), const2(b1),
            const2(w2), const2(b2),
            const2(w3), const2(b3),
        ],
        out_specs=pl.BlockSpec((TB, 1), lambda i: (i, 0)),
        compiler_params=pltpu.CompilerParams(
            dimension_semantics=("parallel",),          # megacore-friendly
            vmem_limit_bytes=48 * 1024 * 1024,          # headroom, < v7x 64 MiB
        ),
    )(x, w1, b1, w2, b2, w3, b3)

    return out


def init_params(key, input_shape):
    """Deterministic init mimicking nn.Linear's default (+/- 1/sqrt(fan_in)).

    Weights stored as (in_features, out_features) so the kernel does x @ W.
    """
    def linear(k, fan_in, fan_out):
        kw, kb = jax.random.split(k)
        bound = 1.0 / jnp.sqrt(fan_in)
        w = jax.random.uniform(kw, (fan_in, fan_out), jnp.float32, -bound, bound)
        b = jax.random.uniform(kb, (1, fan_out), jnp.float32, -bound, bound)
        return w, b

    k1, k2, k3 = jax.random.split(key, 3)
    w1, b1 = linear(k1, input_shape, 32)
    w2, b2 = linear(k2, 32, 64)
    w3, b3 = linear(k3, 64, 1)
    return {"w1": w1, "b1": b1, "w2": w2, "b2": b2, "w3": w3, "b3": b3}


def _reference_f32(x, p):
    h1 = jnp.maximum(x @ p["w1"] + p["b1"], 0.0)
    h2 = jnp.maximum(h1 @ p["w2"] + p["b2"], 0.0)
    return jax.nn.sigmoid(h2 @ p["w3"] + p["b3"])


if __name__ == "__main__":
    key = jax.random.PRNGKey(0)
    kx, kp = jax.random.split(key)

    batch, input_shape = 8, 16
    x = jax.random.normal(kx, (batch, input_shape), jnp.float32)
    # (StandardScaler in the original script just normalizes features; normal
    #  synthetic input already matches that regime.)
    params = init_params(kp, input_shape)

    out = jax.block_until_ready(net_forward(x, params))
    assert out.shape == (batch, 1)
    ref = _reference_f32(x, params)
    # f32 matmuls; only the approx reciprocal (~2^-12 rel) differs from ref.
    assert jnp.allclose(out, ref, atol=2e-3), "mismatch vs f32 reference"

    # Exercise the multi-step pipelined grid, the masked ragged tail (50 % 16
    # != 0, no jnp.pad) and the multi-chunk inner loop (row_chunk < TB).
    x2 = jax.random.normal(kx, (50, input_shape), jnp.float32)
    out2 = jax.block_until_ready(net_forward(x2, params, block_b=16, row_chunk=8))
    assert out2.shape == (50, 1)
    ref2 = _reference_f32(x2, params)
    assert jnp.allclose(out2, ref2, atol=2e-3), "mismatch vs f32 reference (tiled)"

    print("KERNEL_OK")
</pallas_src>

<mosaic_0001>
module attributes {stable_mosaic.version = 11 : i64} {
  func.func @_mlp_kernel(%arg0: i32, %arg1: memref<8x16xf32, #tpu.memory_space<vmem>>, %arg2: memref<16x32xf32, #tpu.memory_space<vmem>>, %arg3: memref<1x32xf32, #tpu.memory_space<vmem>>, %arg4: memref<32x64xf32, #tpu.memory_space<vmem>>, %arg5: memref<1x64xf32, #tpu.memory_space<vmem>>, %arg6: memref<64x1xf32, #tpu.memory_space<vmem>>, %arg7: memref<1x1xf32, #tpu.memory_space<vmem>>, %arg8: memref<8x1xf32, #tpu.memory_space<vmem>>) attributes {dimension_semantics = [#tpu.dimension_semantics<parallel>], iteration_bounds = array<i64: 1>, scalar_prefetch = 0 : i64, scratch_operands = 0 : i64, tpu.core_type = #tpu.core_type<tc>, window_params = [{transform_indices = @transform_0, window_bounds = array<i64: 8, 16>}, {pipeline_mode = #tpu.pipeline_mode<synchronous>, transform_indices = @transform_1, window_bounds = array<i64: 16, 32>}, {pipeline_mode = #tpu.pipeline_mode<synchronous>, transform_indices = @transform_2, window_bounds = array<i64: 1, 32>}, {pipeline_mode = #tpu.pipeline_mode<synchronous>, transform_indices = @transform_3, window_bounds = array<i64: 32, 64>}, {pipeline_mode = #tpu.pipeline_mode<synchronous>, transform_indices = @transform_4, window_bounds = array<i64: 1, 64>}, {pipeline_mode = #tpu.pipeline_mode<synchronous>, transform_indices = @transform_5, window_bounds = array<i64: 64, 1>}, {pipeline_mode = #tpu.pipeline_mode<synchronous>, transform_indices = @transform_6, window_bounds = array<i64: 1, 1>}, {transform_indices = @transform_7, window_bounds = array<i64: 8, 1>}]} {
    %c0 = arith.constant 0 : index
    %c0_0 = arith.constant 0 : index
    %0 = vector.load %arg2[%c0, %c0_0] : memref<16x32xf32, #tpu.memory_space<vmem>>, vector<16x32xf32>
    %c0_1 = arith.constant 0 : index
    %c0_2 = arith.constant 0 : index
    %1 = vector.load %arg3[%c0_1, %c0_2] : memref<1x32xf32, #tpu.memory_space<vmem>>, vector<1x32xf32>
    %c0_3 = arith.constant 0 : index
    %c0_4 = arith.constant 0 : index
    %2 = vector.load %arg4[%c0_3, %c0_4] : memref<32x64xf32, #tpu.memory_space<vmem>>, vector<32x64xf32>
    %c0_5 = arith.constant 0 : index
    %c0_6 = arith.constant 0 : index
    %3 = vector.load %arg5[%c0_5, %c0_6] : memref<1x64xf32, #tpu.memory_space<vmem>>, vector<1x64xf32>
    %c0_7 = arith.constant 0 : index
    %c0_8 = arith.constant 0 : index
    %4 = vector.load %arg6[%c0_7, %c0_8] : memref<64x1xf32, #tpu.memory_space<vmem>>, vector<64x1xf32>
    %c0_9 = arith.constant 0 : index
    %c0_10 = arith.constant 0 : index
    %5 = vector.load %arg7[%c0_9, %c0_10] : memref<1x1xf32, #tpu.memory_space<vmem>>, vector<1x1xf32>
    %c0_i32 = arith.constant 0 : i32
    %c1_i32 = arith.constant 1 : i32
    %6 = arith.muli %c0_i32, %c1_i32 : i32
    %c0_i32_11 = arith.constant 0 : i32
    %7 = arith.addi %c0_i32_11, %6 : i32
    %c8_i32 = arith.constant 8 : i32
    %8 = arith.muli %7, %c8_i32 : i32
    %9 = tpu.assume_multiple %8, 8 : i32
    %10 = arith.index_cast %9 : i32 to index
    %c0_12 = arith.constant 0 : index
    %11 = vector.load %arg1[%10, %c0_12] : memref<8x16xf32, #tpu.memory_space<vmem>>, vector<8x16xf32>
    %cst = arith.constant dense<0.000000e+00> : vector<8x32xf32>
    %12 = tpu.matmul %11, %0, %cst {dimension_numbers = #tpu.dot_dimension_numbers<[1], [0], [0], [1], [0, 0, 1, 1], [], []>} : vector<8x16xf32>, vector<16x32xf32>, vector<8x32xf32> -> vector<8x32xf32>
    %13 = vector.broadcast %1 : vector<1x32xf32> to vector<8x32xf32>
    %14 = arith.addf %12, %13 : vector<8x32xf32>
    %cst_13 = arith.constant 0.000000e+00 : f32
    %15 = vector.broadcast %cst_13 : f32 to vector<8x32xf32>
    %16 = arith.maximumf %14, %15 : vector<8x32xf32>
    %cst_14 = arith.constant dense<0.000000e+00> : vector<8x64xf32>
    %17 = tpu.matmul %16, %2, %cst_14 {dimension_numbers = #tpu.dot_dimension_numbers<[1], [0], [0], [1], [0, 0, 1, 1], [], []>} : vector<8x32xf32>, vector<32x64xf32>, vector<8x64xf32> -> vector<8x64xf32>
    %18 = vector.broadcast %3 : vector<1x64xf32> to vector<8x64xf32>
    %19 = arith.addf %17, %18 : vector<8x64xf32>
    %cst_15 = arith.constant 0.000000e+00 : f32
    %20 = vector.broadcast %cst_15 : f32 to vector<8x64xf32>
    %21 = arith.maximumf %19, %20 : vector<8x64xf32>
    %cst_16 = arith.constant dense<0.000000e+00> : vector<8x1xf32>
    %22 = tpu.matmul %21, %4, %cst_16 {dimension_numbers = #tpu.dot_dimension_numbers<[1], [0], [0], [1], [0, 0, 1, 1], [], []>} : vector<8x64xf32>, vector<64x1xf32>, vector<8x1xf32> -> vector<8x1xf32>
    %23 = vector.broadcast %5 : vector<1x1xf32> to vector<8x1xf32>
    %24 = arith.addf %22, %23 : vector<8x1xf32>
    %cst_17 = arith.constant -3.000000e+01 : f32
    %cst_18 = arith.constant 3.000000e+01 : f32
    %25 = vector.broadcast %cst_17 : f32 to vector<8x1xf32>
    %26 = arith.maximumf %25, %24 : vector<8x1xf32>
    %27 = vector.broadcast %cst_18 : f32 to vector<8x1xf32>
    %28 = arith.minimumf %27, %26 : vector<8x1xf32>
    %cst_19 = arith.constant 0.000000e+00 : f32
    %29 = vector.broadcast %cst_19 : f32 to vector<8x1xf32>
    %30 = arith.subf %29, %28 : vector<8x1xf32>
    %31 = math.exp %30 : vector<8x1xf32>
    %cst_20 = arith.constant 1.000000e+00 : f32
    %32 = vector.broadcast %cst_20 : f32 to vector<8x1xf32>
    %33 = arith.addf %32, %31 : vector<8x1xf32>
    %34 = tpu.reciprocal %33 {approx = true} : vector<8x1xf32> -> vector<8x1xf32>
    %35 = arith.index_cast %9 : i32 to index
    %c0_21 = arith.constant 0 : index
    %36 = vector.load %arg8[%35, %c0_21] : memref<8x1xf32, #tpu.memory_space<vmem>>, vector<8x1xf32>
    tpu.vector_store %arg8[%35, %c0_21], %34 {strides = array<i32>} : memref<8x1xf32, #tpu.memory_space<vmem>>, vector<8x1xf32>,
    %c1_i32_22 = arith.constant 1 : i32
    return
  }
  func.func @transform_0(%arg0: i32) -> (i32, i32) {
    %c0_i32 = arith.constant 0 : i32
    %c0_i32_0 = arith.constant 0 : i32
    return %arg0, %c0_i32 : i32, i32
  }
  func.func @transform_1(%arg0: i32) -> (i32, i32) {
    %c0_i32 = arith.constant 0 : i32
    %c0_i32_0 = arith.constant 0 : i32
    %c0_i32_1 = arith.constant 0 : i32
    return %c0_i32, %c0_i32_0 : i32, i32
  }
  func.func @transform_2(%arg0: i32) -> (i32, i32) {
    %c0_i32 = arith.constant 0 : i32
    %c0_i32_0 = arith.constant 0 : i32
    %c0_i32_1 = arith.constant 0 : i32
    return %c0_i32, %c0_i32_0 : i32, i32
  }
  func.func @transform_3(%arg0: i32) -> (i32, i32) {
    %c0_i32 = arith.constant 0 : i32
    %c0_i32_0 = arith.constant 0 : i32
    %c0_i32_1 = arith.constant 0 : i32
    return %c0_i32, %c0_i32_0 : i32, i32
  }
  func.func @transform_4(%arg0: i32) -> (i32, i32) {
    %c0_i32 = arith.constant 0 : i32
    %c0_i32_0 = arith.constant 0 : i32
    %c0_i32_1 = arith.constant 0 : i32
    return %c0_i32, %c0_i32_0 : i32, i32
  }
  func.func @transform_5(%arg0: i32) -> (i32, i32) {
    %c0_i32 = arith.constant 0 : i32
    %c0_i32_0 = arith.constant 0 : i32
    %c0_i32_1 = arith.constant 0 : i32
    return %c0_i32, %c0_i32_0 : i32, i32
  }
  func.func @transform_6(%arg0: i32) -> (i32, i32) {
    %c0_i32 = arith.constant 0 : i32
    %c0_i32_0 = arith.constant 0 : i32
    %c0_i32_1 = arith.constant 0 : i32
    return %c0_i32, %c0_i32_0 : i32, i32
  }
  func.func @transform_7(%arg0: i32) -> (i32, i32) {
    %c0_i32 = arith.constant 0 : i32
    %c0_i32_0 = arith.constant 0 : i32
    return %arg0, %c0_i32 : i32, i32
  }
}

</mosaic_0001>

<llo_original>
// kernel: net_forward.1
$region0: #{net_forward.1}
  #allocation0 [shape = 'u32[]', space=smem, size = 0x4, offset = 0x4, fixed_abs, tag = 'smem constant byte address 0x4 - core index']
  #allocation1 [shape = 'u32[144,128]{1,0:T(1,128)}', space=vmem, size = 0x12000, scoped, tag = 'internal scratch']
  #allocation2 [shape = 'f32[1,1]{1,0:T(1,128)S(1)}', space=vmem, size = 0x200, scoped, tag = 'scoped memory for net_forward.1']
  %s0 = inlined_call_operand.vmem [shape: f32[8,16], index: 0, kind: input, shape index: {}]
  %s1 = inlined_call_operand.vmem [shape: f32[16,32], index: 1, kind: input, shape index: {}]
  %s2 = inlined_call_operand.vmem [shape: f32[1,32], index: 2, kind: input, shape index: {}]
  %s3 = inlined_call_operand.vmem [shape: f32[32,64], index: 3, kind: input, shape index: {}]
  %s4 = inlined_call_operand.vmem [shape: f32[1,64], index: 4, kind: input, shape index: {}]
  %s5 = inlined_call_operand.vmem [shape: f32[64,1], index: 5, kind: input, shape index: {}]
  %s6 = inlined_call_operand.<no memory space> [shape: f32[1,1], index: 6, kind: input, shape index: {}]
  %s7 = inlined_call_operand.vmem [shape: f32[8,1], index: 7, kind: output, shape index: {}]
  %s8 = sld [smem:[#allocation0]]
  $region38: #{net_forward.1} parent=0
    _
  %s10 = ssub.s32 1, %s8
  %s11 = scalar_select 0, %s10, %s8
  %v12 = vstv %s6
  %13 = vst [vmem:[#allocation2] sm:$0x1] %v12
  // Predicated region
  $region2: #{net_forward.1} parent=0 // pred_check
    _
  $region3: #{net_forward.1} parent=0 // pred_check_branch
    %15 = sbr.rel (0) target = $region5
  $region4: #{net_forward.1} parent=0 // pred_region
    _
  $region5: #{net_forward.1} parent=0 // pred_fallthru
    _
  // Predicated region
  $region6: #{net_forward.1} parent=0 // pred_check
    _
  $region7: #{net_forward.1} parent=0 // pred_check_branch
    %17 = sbr.rel (0) target = $region9
  $region8: #{net_forward.1} parent=0 // pred_region
    _
  $region9: #{net_forward.1} parent=0 // pred_fallthru
    _
  // Predicated region
  $region10: #{net_forward.1} parent=0 // pred_check
    _
  $region11: #{net_forward.1} parent=0 // pred_check_branch
    %19 = sbr.rel (0) target = $region13
  $region12: #{net_forward.1} parent=0 // pred_region
    _
  $region13: #{net_forward.1} parent=0 // pred_fallthru
    _
  // Predicated region
  $region14: #{net_forward.1} parent=0 // pred_check
    _
  $region15: #{net_forward.1} parent=0 // pred_check_branch
    %21 = sbr.rel (0) target = $region17
  $region16: #{net_forward.1} parent=0 // pred_region
    _
  $region17: #{net_forward.1} parent=0 // pred_fallthru
    _
  // Predicated region
  $region18: #{net_forward.1} parent=0 // pred_check
    _
  $region19: #{net_forward.1} parent=0 // pred_check_branch
    %23 = sbr.rel (0) target = $region21
  $region20: #{net_forward.1} parent=0 // pred_region
    _
  $region21: #{net_forward.1} parent=0 // pred_fallthru
    _
  // Predicated region
  $region22: #{net_forward.1} parent=0 // pred_check
    _
  $region23: #{net_forward.1} parent=0 // pred_check_branch
    %25 = sbr.rel (0) target = $region25
  $region24: #{net_forward.1} parent=0 // pred_region
    _
  $region25: #{net_forward.1} parent=0 // pred_fallthru
    _
  // Predicated region
  $region26: #{net_forward.1} parent=0 // pred_check
    _
  $region27: #{net_forward.1} parent=0 // pred_check_branch
    %27 = sbr.rel (0) target = $region29
  $region28: #{net_forward.1} parent=0 // pred_region
    _
  $region29: #{net_forward.1} parent=0 // pred_fallthru
    _
  %v28 = vld [vmem:[%s1] sm:$0xff]
  %v29 = vld [vmem:[%s1 + $0x8] sm:$0xff]
  %v30 = vld [vmem:[%s2] sm:$0x1]
  %v31 = vld [vmem:[%s3] sm:$0xff]
  %v32 = vld [vmem:[%s3 + $0x8] sm:$0xff]
  %v33 = vld [vmem:[%s3 + $0x10] sm:$0xff]
  %v34 = vld [vmem:[%s3 + $0x18] sm:$0xff]
  %v35 = vld [vmem:[%s4] sm:$0x1]
  %v36 = vld [vmem:[%s5] sm:$0xff]
  %v37 = vld [vmem:[%s5 + $0x8] sm:$0xff]
  %v38 = vld [vmem:[%s5 + $0x10] sm:$0xff]
  %v39 = vld [vmem:[%s5 + $0x18] sm:$0xff]
  %v40 = vld [vmem:[%s5 + $0x20] sm:$0xff]
  %v41 = vld [vmem:[%s5 + $0x28] sm:$0xff]
  %v42 = vld [vmem:[%s5 + $0x30] sm:$0xff]
  %v43 = vld [vmem:[%s5 + $0x38] sm:$0xff]
  %v44 = vld [vmem:[#allocation2] sm:$0x1]
  %v45 = vld [vmem:[%s0] sm:$0xff]
  %v47 = vlaneseq
  %v48 = vshrl.u32 %v47, 7
  %v49 = vsub.s32 0, %v48
  %v50 = vrot.slane %v30, %v49
  %vm52 = vcmask 130048
  %v54 = vsel %vm52, %v45, 0
  %56 = vmatprep.subr.mxu0 0.0
  %57 = vmatpush1.msra.mxu0 %v28
  %58 = vmatprep.subr.mxu0 0.0
  %59 = vmatpush1.msra.mxu0 %v29
  %60 = vmatprep.subr.mxu0 0.0
  %61 = vmatpush1.msra.mxu0 0.0
  %62 = vmatprep.subr.mxu0 0.0
  %63 = vmatpush1.msra.mxu0 0.0
  %64 = vmatprep.subr.mxu0 0.0
  %65 = vmatpush1.msra.mxu0 0.0
  %66 = vmatprep.subr.mxu0 0.0
  %67 = vmatpush1.msra.mxu0 0.0
  %68 = vmatprep.subr.mxu0 0.0
  %69 = vmatpush1.msra.mxu0 0.0
  %70 = vmatprep.subr.mxu0 0.0
  %71 = vmatpush1.msra.mxu0 0.0
  %72 = vmatprep.subr.mxu0 0.0
  %73 = vmatpush1.msra.mxu0 0.0
  %74 = vmatprep.subr.mxu0 0.0
  %75 = vmatpush1.msra.mxu0 0.0
  %76 = vmatprep.subr.mxu0 0.0
  %77 = vmatpush1.msra.mxu0 0.0
  %78 = vmatprep.subr.mxu0 0.0
  %79 = vmatpush1.msra.mxu0 0.0
  %80 = vmatprep.subr.mxu0 0.0
  %81 = vmatpush1.msra.mxu0 0.0
  %82 = vmatprep.subr.mxu0 0.0
  %83 = vmatpush1.msra.mxu0 0.0
  %84 = vmatprep.subr.mxu0 0.0
  %85 = vmatpush1.msra.mxu0 0.0
  %86 = vmatprep.subr.mxu0 0.0
  %87 = vmatpush1.msra.mxu0 0.0
  %88 = vmatprep.subr.mxu0 0.0
  %89 = vmatpush1.msra.mxu0 0.0
  %90 = vmatprep.subr.mxu0 0.0
  %91 = vmatpush1.msra.mxu0 0.0
  %92 = vmatprep.subr.mxu0 0.0
  %93 = vmatpush1.msra.mxu0 0.0
  %94 = vmatprep.subr.mxu0 0.0
  %95 = vmatpush1.msra.mxu0 0.0
  %96 = vmatprep.subr.mxu0 0.0
  %97 = vmatpush1.msra.mxu0 0.0
  %98 = vmatprep.subr.mxu0 0.0
  %99 = vmatpush1.msra.mxu0 0.0
  %100 = vmatprep.subr.mxu0 0.0
  %101 = vmatpush1.msra.mxu0 0.0
  %102 = vmatprep.subr.mxu0 0.0
  %103 = vmatpush1.msra.mxu0 0.0
  %104 = vmatprep.subr.mxu0 0.0
  %105 = vmatpush1.msra.mxu0 0.0
  %106 = vmatprep.subr.mxu0 0.0
  %107 = vmatpush1.msra.mxu0 0.0
  %108 = vmatprep.subr.mxu0 0.0
  %109 = vmatpush1.msra.mxu0 0.0
  %110 = vmatprep.subr.mxu0 0.0
  %111 = vmatpush1.msra.mxu0 0.0
  %112 = vmatprep.subr.mxu0 0.0
  %113 = vmatpush1.msra.mxu0 0.0
  %114 = vmatprep.subr.mxu0 0.0
  %115 = vmatpush1.msra.mxu0 0.0
  %116 = vmatprep.subr.mxu0 0.0
  %117 = vmatpush1.msra.mxu0 0.0
  %118 = vmatprep.subr.mxu0 0.0
  %119 = vmatpush1.msra.mxu0 0.0
  %120 = vmatprep.mubr.f32.mxu0 0.0
  %121 = vmatmul.mubr.f32.gmra.mrb[0].mxu0 %v54
  %v122 = vpop.f32.mrb[0].mxu0
  %v123 = vadd.f32 %v50, %v122
  %v124 = vpop.f32.mrb[0].mxu0
  %125 = vdwg.mxu0
  %v126 = vmax.f32 %v123, 0.0
  %v128 = vlaneseq
  %v129 = vshrl.u32 %v128, 7
  %v130 = vsub.s32 0, %v129
  %v131 = vrot.slane %v35, %v130
  %vm133 = vcmask 261120
  %v135 = vsel %vm133, %v126, 0
  %137 = vmatprep.subr.mxu0 0.0
  %138 = vmatpush1.msra.mxu0 %v31
  %139 = vmatprep.subr.mxu0 0.0
  %140 = vmatpush1.msra.mxu0 %v32
  %141 = vmatprep.subr.mxu0 0.0
  %142 = vmatpush1.msra.mxu0 %v33
  %143 = vmatprep.subr.mxu0 0.0
  %144 = vmatpush1.msra.mxu0 %v34
  %145 = vmatprep.subr.mxu0 0.0
  %146 = vmatpush1.msra.mxu0 0.0
  %147 = vmatprep.subr.mxu0 0.0
  %148 = vmatpush1.msra.mxu0 0.0
  %149 = vmatprep.subr.mxu0 0.0
  %150 = vmatpush1.msra.mxu0 0.0
  %151 = vmatprep.subr.mxu0 0.0
  %152 = vmatpush1.msra.mxu0 0.0
  %153 = vmatprep.subr.mxu0 0.0
  %154 = vmatpush1.msra.mxu0 0.0
  %155 = vmatprep.subr.mxu0 0.0
  %156 = vmatpush1.msra.mxu0 0.0
  %157 = vmatprep.subr.mxu0 0.0
  %158 = vmatpush1.msra.mxu0 0.0
  %159 = vmatprep.subr.mxu0 0.0
  %160 = vmatpush1.msra.mxu0 0.0
  %161 = vmatprep.subr.mxu0 0.0
  %162 = vmatpush1.msra.mxu0 0.0
  %163 = vmatprep.subr.mxu0 0.0
  %164 = vmatpush1.msra.mxu0 0.0
  %165 = vmatprep.subr.mxu0 0.0
  %166 = vmatpush1.msra.mxu0 0.0
  %167 = vmatprep.subr.mxu0 0.0
  %168 = vmatpush1.msra.mxu0 0.0
  %169 = vmatprep.subr.mxu0 0.0
  %170 = vmatpush1.msra.mxu0 0.0
  %171 = vmatprep.subr.mxu0 0.0
  %172 = vmatpush1.msra.mxu0 0.0
  %173 = vmatprep.subr.mxu0 0.0
  %174 = vmatpush1.msra.mxu0 0.0
  %175 = vmatprep.subr.mxu0 0.0
  %176 = vmatpush1.msra.mxu0 0.0
  %177 = vmatprep.subr.mxu0 0.0
  %178 = vmatpush1.msra.mxu0 0.0
  %179 = vmatprep.subr.mxu0 0.0
  %180 = vmatpush1.msra.mxu0 0.0
  %181 = vmatprep.subr.mxu0 0.0
  %182 = vmatpush1.msra.mxu0 0.0
  %183 = vmatprep.subr.mxu0 0.0
  %184 = vmatpush1.msra.mxu0 0.0
  %185 = vmatprep.subr.mxu0 0.0
  %186 = vmatpush1.msra.mxu0 0.0
  %187 = vmatprep.subr.mxu0 0.0
  %188 = vmatpush1.msra.mxu0 0.0
  %189 = vmatprep.subr.mxu0 0.0
  %190 = vmatpush1.msra.mxu0 0.0
  %191 = vmatprep.subr.mxu0 0.0
  %192 = vmatpush1.msra.mxu0 0.0
  %193 = vmatprep.subr.mxu0 0.0
  %194 = vmatpush1.msra.mxu0 0.0
  %195 = vmatprep.subr.mxu0 0.0
  %196 = vmatpush1.msra.mxu0 0.0
  %197 = vmatprep.subr.mxu0 0.0
  %198 = vmatpush1.msra.mxu0 0.0
  %199 = vmatprep.subr.mxu0 0.0
  %200 = vmatpush1.msra.mxu0 0.0
  %201 = vmatprep.mubr.f32.mxu0 0.0
  %202 = vmatmul.mubr.f32.gmra.mrb[0].mxu0 %v135
  %v203 = vpop.f32.mrb[0].mxu0
  %v204 = vadd.f32 %v131, %v203
  %v205 = vpop.f32.mrb[0].mxu0
  %206 = vdwg.mxu0
  %v207 = vmax.f32 %v204, 0.0
  %v209 = vlaneseq
  %v210 = vshrl.u32 %v209, 7
  %v211 = vsub.s32 0, %v210
  %v212 = vrot.slane %v44, %v211
  %vm214 = vcmask 523264
  %v216 = vsel %vm214, %v207, 0
  %218 = vmatprep.subr.mxu0 0.0
  %219 = vmatpush1.msra.mxu0 %v36
  %220 = vmatprep.subr.mxu0 0.0
  %221 = vmatpush1.msra.mxu0 %v37
  %222 = vmatprep.subr.mxu0 0.0
  %223 = vmatpush1.msra.mxu0 %v38
  %224 = vmatprep.subr.mxu0 0.0
  %225 = vmatpush1.msra.mxu0 %v39
  %226 = vmatprep.subr.mxu0 0.0
  %227 = vmatpush1.msra.mxu0 %v40
  %228 = vmatprep.subr.mxu0 0.0
  %229 = vmatpush1.msra.mxu0 %v41
  %230 = vmatprep.subr.mxu0 0.0
  %231 = vmatpush1.msra.mxu0 %v42
  %232 = vmatprep.subr.mxu0 0.0
  %233 = vmatpush1.msra.mxu0 %v43
  %234 = vmatprep.subr.mxu0 0.0
  %235 = vmatpush1.msra.mxu0 0.0
  %236 = vmatprep.subr.mxu0 0.0
  %237 = vmatpush1.msra.mxu0 0.0
  %238 = vmatprep.subr.mxu0 0.0
  %239 = vmatpush1.msra.mxu0 0.0
  %240 = vmatprep.subr.mxu0 0.0
  %241 = vmatpush1.msra.mxu0 0.0
  %242 = vmatprep.subr.mxu0 0.0
  %243 = vmatpush1.msra.mxu0 0.0
  %244 = vmatprep.subr.mxu0 0.0
  %245 = vmatpush1.msra.mxu0 0.0
  %246 = vmatprep.subr.mxu0 0.0
  %247 = vmatpush1.msra.mxu0 0.0
  %248 = vmatprep.subr.mxu0 0.0
  %249 = vmatpush1.msra.mxu0 0.0
  %250 = vmatprep.subr.mxu0 0.0
  %251 = vmatpush1.msra.mxu0 0.0
  %252 = vmatprep.subr.mxu0 0.0
  %253 = vmatpush1.msra.mxu0 0.0
  %254 = vmatprep.subr.mxu0 0.0
  %255 = vmatpush1.msra.mxu0 0.0
  %256 = vmatprep.subr.mxu0 0.0
  %257 = vmatpush1.msra.mxu0 0.0
  %258 = vmatprep.subr.mxu0 0.0
  %259 = vmatpush1.msra.mxu0 0.0
  %260 = vmatprep.subr.mxu0 0.0
  %261 = vmatpush1.msra.mxu0 0.0
  %262 = vmatprep.subr.mxu0 0.0
  %263 = vmatpush1.msra.mxu0 0.0
  %264 = vmatprep.subr.mxu0 0.0
  %265 = vmatpush1.msra.mxu0 0.0
  %266 = vmatprep.subr.mxu0 0.0
  %267 = vmatpush1.msra.mxu0 0.0
  %268 = vmatprep.subr.mxu0 0.0
  %269 = vmatpush1.msra.mxu0 0.0
  %270 = vmatprep.subr.mxu0 0.0
  %271 = vmatpush1.msra.mxu0 0.0
  %272 = vmatprep.subr.mxu0 0.0
  %273 = vmatpush1.msra.mxu0 0.0
  %274 = vmatprep.subr.mxu0 0.0
  %275 = vmatpush1.msra.mxu0 0.0
  %276 = vmatprep.subr.mxu0 0.0
  %277 = vmatpush1.msra.mxu0 0.0
  %278 = vmatprep.subr.mxu0 0.0
  %279 = vmatpush1.msra.mxu0 0.0
  %280 = vmatprep.subr.mxu0 0.0
  %281 = vmatpush1.msra.mxu0 0.0
  %282 = vmatprep.mubr.f32.mxu0 0.0
  %283 = vmatmul.mubr.f32.gmra.mrb[0].mxu0 %v216
  %v284 = vpop.f32.mrb[0].mxu0
  %v285 = vadd.f32 %v212, %v284
  %v286 = vpop.f32.mrb[0].mxu0
  %287 = vdwg.mxu0
  %v288 = vmax.f32 %v285, -30.0
  %v289 = vmin.f32 %v288, 30.0
  %v290 = vsub.f32 0.0, %v289
  %v291 = vmul.f32 %v290, 1.442695
  %v292 = vpow.pop %v291
  %v293 = vadd.f32 %v292, 1.0
  %v294 = vrcp.pop %v293
  %vm295 = vcmask 7168
  %296 = vst.msk [vmem:[%s7] sm:$0xff] %vm295, %v294
  // Predicated region
  $region30: #{net_forward.1} parent=0 // pred_check
    _
  $region31: #{net_forward.1} parent=0 // pred_check_branch
    %298 = sbr.rel (0) target = $region33
  $region32: #{net_forward.1} parent=0 // pred_region
    _
  $region33: #{net_forward.1} parent=0 // pred_fallthru
    _
  // Predicated region
  $region34: #{net_forward.1} parent=0 // pred_check
    _
  $region35: #{net_forward.1} parent=0 // pred_check_branch
    %300 = sbr.rel (0) target = $region37
  $region36: #{net_forward.1} parent=0 // pred_region
    _
  $region37: #{net_forward.1} parent=0 // pred_fallthru
    _

</llo_original>
